<compile_context>
chip_gen: v7x
topology: tpu7x:2x2x1
jax: 0.10.0
libtpu: 0.0.40
codegen_flags: <defaults>
</compile_context>

<pallas_src>
import math
from functools import partial

import jax
import jax.numpy as jnp
from jax.experimental import pallas as pl
from jax.experimental.pallas import tpu as pltpu


# Taylor coefficients of sin(2*pi*s) in "turns"; used on |s| <= 0.25 only,
# where the degree-11 truncation error is ~6e-8.
_TWO_PI = 2.0 * math.pi
_S1 = _TWO_PI
_S3 = -_TWO_PI ** 3 / math.factorial(3)
_S5 = _TWO_PI ** 5 / math.factorial(5)
_S7 = -_TWO_PI ** 7 / math.factorial(7)
_S9 = _TWO_PI ** 9 / math.factorial(9)
_S11 = -_TWO_PI ** 11 / math.factorial(11)


def _sinusoidal_kernel(phase_ref, const_ref, out_ref, *, embed_dim, rows_per_group):
    # phase_ref: (TBg, R)   const_ref: (2, R*embed_dim)   out_ref: (TBg, R*embed_dim)
    R = rows_per_group
    W = R * embed_dim
    phase = phase_ref[...].astype(jnp.float32)                      # (TBg, R)
    tb = phase.shape[0]

    # Lane-expand phase into the folded row-major layout: column r*embed_dim+k
    # of a grouped row holds batch element g*R + r.  This is the single
    # relayout op of the kernel; everything below runs on full-width vregs.
    ph = jnp.broadcast_to(phase[:, :, None], (tb, R, embed_dim)).reshape(tb, W)

    freq = const_ref[0:1, :]     # (1, W): 10000 ** -((k % L) / L), in turns
    quad = const_ref[1:2, :]     # (1, W): 0.25 turn on the cos half, else 0

    # Angle in turns; the quarter-turn offset implements cos via sin.
    t = ph * freq + quad

    # Range reduction: r in [-0.5, 0.5] turns, then fold to |s| <= 0.25 turn
    # using sin(2*pi*r) = sin(2*pi*(+-0.5 - r)).
    r = t - jnp.floor(t + 0.5)
    s = jnp.where(r > 0.25, 0.5 - r, r)
    s = jnp.where(r < -0.25, -0.5 - r, s)

    # sin(2*pi*s) via an odd degree-11 polynomial (Horner on s^2).
    s2 = s * s
    p = _S11
    p = p * s2 + _S9
    p = p * s2 + _S7
    p = p * s2 + _S5
    p = p * s2 + _S3
    p = p * s2 + _S1
    out_ref[...] = (p * s).astype(out_ref.dtype)


def sinusoidal_embedding_v2(phase, embed_dim, *, out_dtype=jnp.float32):
    """phase: (...,) array with values in [0, 1]; returns (..., embed_dim)."""
    assert embed_dim % 2 == 0
    L = embed_dim // 2

    orig_shape = phase.shape
    phase_flat = jnp.asarray(phase, jnp.float32).reshape(-1)
    B = phase_flat.shape[0]

    # Fold R consecutive rows into the lane axis so the stored block's last
    # dim is a multiple of 128 lanes (lane-dense, unmasked stores).
    R = max(1, 128 // math.gcd(embed_dim, 128))
    W = R * embed_dim
    Bp = pl.cdiv(B, R) * R
    if Bp != B:
        phase_flat = jnp.pad(phase_flat, (0, Bp - B))
    Bg = Bp // R
    phase_g = phase_flat.reshape(Bg, R)

    # Per-lane constants over the folded axis (frequency in turns + quadrature
    # offset).  Constant index_map -> fetched once, resident across all steps.
    lane = jnp.arange(W)
    k = lane % embed_dim
    fidx = (k % L).astype(jnp.float32)
    freq_turns = 1.0 / (10000.0 ** (fidx / L))          # matches torch buffer
    quad_turns = jnp.where(k >= L, 0.25, 0.0).astype(jnp.float32)
    consts = jnp.stack([freq_turns, quad_turns]).astype(jnp.float32)  # (2, W)

    # Tile rows from bytes (~4 MiB of output per tile), multiple of 8 rows.
    itemsize = jnp.dtype(out_dtype).itemsize
    row_bytes = W * itemsize
    target_tile_bytes = 4 * 1024 * 1024
    TBg = max(8, (target_tile_bytes // max(row_bytes, 1)) // 8 * 8)
    if TBg >= Bg:
        if Bg >= 16:
            # Split a would-be single-tile launch into >=2 grid steps so the
            # ("parallel",) axis can be sharded across both v7x TensorCores.
            TBg = ((Bg + 1) // 2 + 7) // 8 * 8
        else:
            TBg = Bg  # full-extent block is always a legal block shape
    grid = (pl.cdiv(Bg, TBg),)

    kernel = partial(_sinusoidal_kernel, embed_dim=embed_dim, rows_per_group=R)

    out_bytes = Bg * W * itemsize
    cost = pl.CostEstimate(
        flops=24 * Bg * W,            # mul-add + range reduction + polynomial
        transcendentals=0,            # no EUP sin on TPU; poly runs on the VPU
        bytes_accessed=Bg * R * 4 + 2 * W * 4 + out_bytes,
    )

    out_g = pl.pallas_call(
        kernel,
        out_shape=jax.ShapeDtypeStruct((Bg, W), out_dtype),
        grid=grid,
        in_specs=[pl.BlockSpec((TBg, R), lambda i: (i, 0)),
                  pl.BlockSpec((2, W), lambda i: (0, 0))],
        out_specs=pl.BlockSpec((TBg, W), lambda i: (i, 0)),
        compiler_params=pltpu.CompilerParams(
            dimension_semantics=("parallel",)),
        cost_estimate=cost,
    )(phase_g, consts)

    # Grouped (Bg, W) rows are row-major identical to (Bp, embed_dim).
    out = out_g.reshape(Bp, embed_dim)
    if Bp != B:
        # NOTE: this tail slice is an extra full XLA copy when run stand-alone;
        # prefer R-aligned flattened batches (or fuse into the consumer).
        out = out[:B]
    return out.reshape(*orig_shape, embed_dim)


def _reference(phase, embed_dim):
    L = embed_dim // 2
    freqs = 1.0 / (10000.0 ** (jnp.arange(L, dtype=jnp.float32) / L))
    angles = 2.0 * math.pi * phase[..., None].astype(jnp.float32) * freqs
    return jnp.concatenate([jnp.sin(angles), jnp.cos(angles)], axis=-1)


if __name__ == "__main__":
    embed_dim = 32           # -> max_level = 16, R = 4 (lane-dense 128)

    # 1) small R-aligned batch
    phase = jax.random.uniform(jax.random.PRNGKey(0), (8,), dtype=jnp.float32)
    out = jax.block_until_ready(sinusoidal_embedding_v2(phase, embed_dim))
    assert out.shape == (8, embed_dim)
    assert jnp.allclose(out, _reference(phase, embed_dim), atol=2e-5, rtol=1e-5)

    # 2) multi-dim phase whose flattened batch (10) is not a multiple of R=4:
    #    exercises the wrapper padding + ragged-unpad path.
    phase2 = jax.random.uniform(jax.random.PRNGKey(1), (2, 5), dtype=jnp.float32)
    out2 = jax.block_until_ready(sinusoidal_embedding_v2(phase2, embed_dim))
    assert out2.shape == (2, 5, embed_dim)
    assert jnp.allclose(out2, _reference(phase2, embed_dim), atol=2e-5, rtol=1e-5)

    # 3) B=70 -> Bg=18, TBg=16: two grid steps with a partial last block AND a
    #    ragged tail (B % R != 0); locks in padded-row / masked-store behavior.
    phase3 = jax.random.uniform(jax.random.PRNGKey(2), (70,), dtype=jnp.float32)
    out3 = jax.block_until_ready(sinusoidal_embedding_v2(phase3, embed_dim))
    assert out3.shape == (70, embed_dim)
    assert jnp.allclose(out3, _reference(phase3, embed_dim), atol=2e-5, rtol=1e-5)

    print("KERNEL_OK")
</pallas_src>

<mosaic_0001>
module attributes {stable_mosaic.version = 11 : i64} {
  func.func @_sinusoidal_kernel(%arg0: i32, %arg1: memref<2x4xf32, #tpu.memory_space<vmem>>, %arg2: memref<2x128xf32, #tpu.memory_space<vmem>>, %arg3: memref<2x128xf32, #tpu.memory_space<vmem>>) attributes {dimension_semantics = [#tpu.dimension_semantics<parallel>], iteration_bounds = array<i64: 1>, scalar_prefetch = 0 : i64, scratch_operands = 0 : i64, tpu.core_type = #tpu.core_type<tc>, window_params = [{transform_indices = @transform_0, window_bounds = array<i64: 2, 4>}, {pipeline_mode = #tpu.pipeline_mode<synchronous>, transform_indices = @transform_1, window_bounds = array<i64: 2, 128>}, {transform_indices = @transform_2, window_bounds = array<i64: 2, 128>}]} {
    %c0 = arith.constant 0 : index
    %c0_0 = arith.constant 0 : index
    %0 = vector.load %arg1[%c0, %c0_0] : memref<2x4xf32, #tpu.memory_space<vmem>>, vector<2x4xf32>
    %1 = vector.shape_cast %0 : vector<2x4xf32> to vector<2x4x1xf32>
    %2 = vector.shape_cast %1 : vector<2x4x1xf32> to vector<2x4x1xf32>
    %3 = vector.broadcast %2 : vector<2x4x1xf32> to vector<2x4x32xf32>
    %4 = vector.shape_cast %3 : vector<2x4x32xf32> to vector<2x128xf32>
    %c0_1 = arith.constant 0 : index
    %c0_2 = arith.constant 0 : index
    %5 = vector.load %arg2[%c0_1, %c0_2] : memref<2x128xf32, #tpu.memory_space<vmem>>, vector<1x128xf32>
    %c1 = arith.constant 1 : index
    %c0_3 = arith.constant 0 : index
    %6 = vector.load %arg2[%c1, %c0_3] : memref<2x128xf32, #tpu.memory_space<vmem>>, vector<1x128xf32>
    %7 = vector.broadcast %5 : vector<1x128xf32> to vector<2x128xf32>
    %8 = arith.mulf %4, %7 : vector<2x128xf32>
    %9 = vector.broadcast %6 : vector<1x128xf32> to vector<2x128xf32>
    %10 = arith.addf %8, %9 : vector<2x128xf32>
    %cst = arith.constant 5.000000e-01 : f32
    %11 = vector.broadcast %cst : f32 to vector<2x128xf32>
    %12 = arith.addf %10, %11 : vector<2x128xf32>
    %13 = math.floor %12 : vector<2x128xf32>
    %14 = arith.subf %10, %13 : vector<2x128xf32>
    %cst_4 = arith.constant 2.500000e-01 : f32
    %15 = vector.broadcast %cst_4 : f32 to vector<2x128xf32>
    %16 = arith.cmpf ogt, %14, %15 : vector<2x128xf32>
    %cst_5 = arith.constant 5.000000e-01 : f32
    %17 = vector.broadcast %cst_5 : f32 to vector<2x128xf32>
    %18 = arith.subf %17, %14 : vector<2x128xf32>
    %19 = arith.select %16, %18, %14 : vector<2x128xi1>, vector<2x128xf32>
    %cst_6 = arith.constant -2.500000e-01 : f32
    %20 = vector.broadcast %cst_6 : f32 to vector<2x128xf32>
    %21 = arith.cmpf olt, %14, %20 : vector<2x128xf32>
    %cst_7 = arith.constant -5.000000e-01 : f32
    %22 = vector.broadcast %cst_7 : f32 to vector<2x128xf32>
    %23 = arith.subf %22, %14 : vector<2x128xf32>
    %24 = arith.select %21, %23, %19 : vector<2x128xi1>, vector<2x128xf32>
    %25 = arith.mulf %24, %24 : vector<2x128xf32>
    %cst_8 = arith.constant -15.0946426 : f32
    %26 = vector.broadcast %cst_8 : f32 to vector<2x128xf32>
    %27 = arith.mulf %26, %25 : vector<2x128xf32>
    %cst_9 = arith.constant 42.0586929 : f32
    %28 = vector.broadcast %cst_9 : f32 to vector<2x128xf32>
    %29 = arith.addf %27, %28 : vector<2x128xf32>
    %30 = arith.mulf %29, %25 : vector<2x128xf32>
    %cst_10 = arith.constant -76.7058563 : f32
    %31 = vector.broadcast %cst_10 : f32 to vector<2x128xf32>
    %32 = arith.addf %30, %31 : vector<2x128xf32>
    %33 = arith.mulf %32, %25 : vector<2x128xf32>
    %cst_11 = arith.constant 81.6052475 : f32
    %34 = vector.broadcast %cst_11 : f32 to vector<2x128xf32>
    %35 = arith.addf %33, %34 : vector<2x128xf32>
    %36 = arith.mulf %35, %25 : vector<2x128xf32>
    %cst_12 = arith.constant -4.134170e+01 : f32
    %37 = vector.broadcast %cst_12 : f32 to vector<2x128xf32>
    %38 = arith.addf %36, %37 : vector<2x128xf32>
    %39 = arith.mulf %38, %25 : vector<2x128xf32>
    %cst_13 = arith.constant 6.28318548 : f32
    %40 = vector.broadcast %cst_13 : f32 to vector<2x128xf32>
    %41 = arith.addf %39, %40 : vector<2x128xf32>
    %42 = arith.mulf %41, %24 : vector<2x128xf32>
    %c0_14 = arith.constant 0 : index
    %c0_15 = arith.constant 0 : index
    %43 = vector.load %arg3[%c0_14, %c0_15] : memref<2x128xf32, #tpu.memory_space<vmem>>, vector<2x128xf32>
    tpu.vector_store %arg3[%c0_14, %c0_15], %42 {strides = array<i32>} : memref<2x128xf32, #tpu.memory_space<vmem>>, vector<2x128xf32>,
    return
  }
  func.func @transform_0(%arg0: i32) -> (i32, i32) {
    %c0_i32 = arith.constant 0 : i32
    %c0_i32_0 = arith.constant 0 : i32
    return %arg0, %c0_i32 : i32, i32
  }
  func.func @transform_1(%arg0: i32) -> (i32, i32) {
    %c0_i32 = arith.constant 0 : i32
    %c0_i32_0 = arith.constant 0 : i32
    %c0_i32_1 = arith.constant 0 : i32
    return %c0_i32, %c0_i32_0 : i32, i32
  }
  func.func @transform_2(%arg0: i32) -> (i32, i32) {
    %c0_i32 = arith.constant 0 : i32
    %c0_i32_0 = arith.constant 0 : i32
    return %arg0, %c0_i32 : i32, i32
  }
}

</mosaic_0001>

<llo_original>
// kernel: tpu_custom_call.1
$region0: #{tpu_custom_call.1}
  #allocation0 [shape = 'u32[]', space=smem, size = 0x4, offset = 0x4, fixed_abs, tag = 'smem constant byte address 0x4 - core index']
  #allocation1 [shape = 'u32[144,128]{1,0:T(1,128)}', space=vmem, size = 0x12000, scoped, tag = 'internal scratch']
  %s0 = inlined_call_operand.hbm [shape: f32[2,4], index: 0, kind: input, shape index: {}]
  %s1 = inlined_call_operand.vmem [shape: f32[2,128], index: 1, kind: input, shape index: {}]
  %s2 = inlined_call_operand.hbm [shape: f32[2,128], index: 2, kind: output, shape index: {}]
  %s3 = sld [smem:[#allocation0]]
  $region22: #{tpu_custom_call.1} parent=0
    _
  %s5 = ssub.s32 1, %s3
  %s6 = scalar_select 0, %s5, %s3
  $region1: #{tpu_custom_call.1} parent=0
    #allocation2 [shape = 'u8[1024]{0}', space=vmem, size = 0x400, scoped, tag = 'input window, operand 0, single buffered']
    #allocation3 [shape = 's32[1]{0}', space=sflag, size = 0x4, scoped, tag = 'scoped memory for tpu_custom_call.1']
    #allocation4 [shape = 's32[1]{0}', space=sflag, size = 0x4, scoped, tag = 'scoped memory for tpu_custom_call.1']
    #allocation5 [shape = 'u8[1024]{0}', space=vmem, size = 0x400, scoped, tag = 'output window, operand 0, single buffered']
    %7 = vsyncpa [#allocation3], 0
    %8 = vsyncpa [#allocation4], 0
    // Predicated region
    $region2: #{tpu_custom_call.1} parent=1 // pred_check
      _
    $region3: #{tpu_custom_call.1} parent=1 // pred_check_branch
      %10 = sbr.rel (0) target = $region5
    $region4: #{tpu_custom_call.1} parent=1 // pred_region
      %s12 = ssub.s32 32, 32
      %13 = vsyncadd [#allocation3], %s12
      %s15 = sshll.u32 [#allocation2], 4
      %s16 = int_to_ptr.vmem [resolvable:$true] %s15
      %18 = dma.hbm_to_vmem [thread:$0]  %s0, 32, %s16, [#allocation3]
    $region5: #{tpu_custom_call.1} parent=1 // pred_fallthru
      _
    // Predicated region
    $region6: #{tpu_custom_call.1} parent=1 // pred_check
      _
    $region7: #{tpu_custom_call.1} parent=1 // pred_check_branch
      %20 = sbr.rel (0) target = $region9
    $region8: #{tpu_custom_call.1} parent=1 // pred_region
      _
    $region9: #{tpu_custom_call.1} parent=1 // pred_fallthru
      _
    // Predicated region
    $region10: #{tpu_custom_call.1} parent=1 // pred_check
      _
    $region11: #{tpu_custom_call.1} parent=1 // pred_check_branch
      %22 = sbr.rel (0) target = $region13
    $region12: #{tpu_custom_call.1} parent=1 // pred_region
      %23 = dma.done [#allocation3], 32
    $region13: #{tpu_custom_call.1} parent=1 // pred_fallthru
      _
    %v24 = vld [vmem:[#allocation2] sm:$0x3]
    %v25 = vlaneseq
    %v26 = vshrl.u32 %v25, 7
    %v27 = vsub.s32 0, %v26
    %v28 = vrot.slane %v24, %v27
    %v29 = vlaneseq
    %v30 = vshrl.u32 %v29, 7
    %v31 = vsub.s32 1, %v30
    %v32 = vrot.slane %v24, %v31
    %34 = vbcast.lane.b32.xlu0 %v28, 256
    %v35 = vpop.permute.xlu0 %34
    %v37 = vunpack.c.l.s4 1983009808
    %v38 = vunpack.c.0.s8 %v37
    %v39 = vlaneseq
    %v40 = vshrl.u32 %v39, 7
    %v41 = vsub.s32 %v38, %v40
    %v42 = vrot.slane %v35, %v41
    %44 = vbcast.lane.b32.xlu0 %v32, 256
    %v45 = vpop.permute.xlu0 %44
    %v47 = vunpack.c.l.s4 1983009808
    %v48 = vunpack.c.0.s8 %v47
    %v49 = vlaneseq
    %v50 = vshrl.u32 %v49, 7
    %v51 = vsub.s32 %v48, %v50
    %v52 = vrot.slane %v45, %v51
    %v53 = vcombine.low %v42, %v52
    %v54 = vcombine.high %v42, %v52
    %v56 = vunpack.c.l.s4 1934713408
    %v57 = vunpack.c.0.s8 %v56
    %v58 = vlaneseq
    %v59 = vshrl.u32 %v58, 7
    %v60 = vsub.s32 %v57, %v59
    %v61 = vrot.slane %v53, %v60
    %v63 = vunpack.c.l.s4 1934713408
    %v64 = vunpack.c.0.s8 %v63
    %v65 = vlaneseq
    %v66 = vshrl.u32 %v65, 7
    %v67 = vsub.s32 %v64, %v66
    %v68 = vrot.slane %v54, %v67
    %v69 = vcombine.high %v61, 0.0
    %v70 = vcombine.high %v68, 0.0
    %72 = vrot.lane.b32.xlu0 %v69, 32
    %v73 = vpop.permute.xlu0 %72
    %76 = vrot.lane.b32.xlu0 %v68, 64
    %v77 = vpop.permute.xlu0 %76
    %80 = vrot.lane.b32.xlu0 %v70, 96
    %v81 = vpop.permute.xlu0 %80
    %vm83 = vcmask 261120
    %v84 = vsel %vm83, %v61, %v73
    %vm85 = vcmask 523264
    %v86 = vsel %vm85, %v84, %v77
    %vm87 = vcmask 785408
    %v88 = vsel %vm87, %v86, %v81
    %v89 = vld [vmem:[%s1] sm:$0x1]
    %v90 = vld [vmem:[%s1 + $0x1] sm:$0x1]
    %v91 = vlaneseq
    %v92 = vshrl.u32 %v91, 7
    %v93 = vsub.s32 0, %v92
    %v94 = vrot.slane %v89, %v93
    %v95 = vmul.f32 %v88, %v94
    %v96 = vlaneseq
    %v97 = vshrl.u32 %v96, 7
    %v98 = vsub.s32 0, %v97
    %v99 = vrot.slane %v90, %v98
    %v100 = vadd.f32 %v95, %v99
    %v101 = vadd.f32 %v100, 0.5
    %v102 = vfloor.f32 %v101
    %v103 = vsub.f32 %v100, %v102
    %vm104 = vcmp.gt.f32.partialorder %v103, 0.25
    %v105 = vsub.f32 0.5, %v103
    %v106 = vsel %vm104, %v105, %v103
    %vm107 = vcmp.lt.f32.partialorder %v103, -0.25
    %v108 = vsub.f32 -0.5, %v103
    %v109 = vsel %vm107, %v108, %v106
    %v110 = vmul.f32 %v109, %v109
    %v111 = vmul.f32 %v110, -15.094643
    %v112 = vadd.f32 %v111, 42.058693
    %v113 = vmul.f32 %v112, %v110
    %v114 = vadd.f32 %v113, -76.70586
    %v115 = vmul.f32 %v114, %v110
    %v116 = vadd.f32 %v115, 81.60525
    %v117 = vmul.f32 %v116, %v110
    %v118 = vadd.f32 %v117, -41.3417
    %v119 = vmul.f32 %v118, %v110
    %v120 = vadd.f32 %v119, 6.2831855
    %v121 = vmul.f32 %v120, %v109
    %122 = vst [vmem:[#allocation5] sm:$0x3] %v121
    // Predicated region
    $region14: #{tpu_custom_call.1} parent=1 // pred_check
      _
    $region15: #{tpu_custom_call.1} parent=1 // pred_check_branch
      %124 = sbr.rel (0) target = $region17
    $region16: #{tpu_custom_call.1} parent=1 // pred_region
      %s126 = ssub.s32 32, 32
      %127 = vsyncadd [#allocation4], %s126
      %s129 = sshll.u32 [#allocation5], 4
      %s130 = int_to_ptr.vmem [resolvable:$true] %s129
      %132 = dma.vmem_to_hbm [thread:$0]  %s130, 32, %s2, [#allocation4]
    $region17: #{tpu_custom_call.1} parent=1 // pred_fallthru
      _
    // Predicated region
    $region18: #{tpu_custom_call.1} parent=1 // pred_check
      _
    $region19: #{tpu_custom_call.1} parent=1 // pred_check_branch
      %134 = sbr.rel (0) target = $region21
    $region20: #{tpu_custom_call.1} parent=1 // pred_region
      %135 = dma.done [#allocation4], 32
    $region21: #{tpu_custom_call.1} parent=1 // pred_fallthru
      _
    %136 = vsyncpa [#allocation3], 1
    %137 = vsyncpa [#allocation4], 1

</llo_original>
